<compile_context>
chip_gen: v6e
topology: v6e:2x2x1
jax: 0.10.0
libtpu: 0.0.40
codegen_flags: <defaults>
</compile_context>

<pallas_src>
import functools

import jax
import jax.numpy as jnp
from jax.experimental import pallas as pl
from jax.experimental.pallas import tpu as pltpu

LANES = 128               # vreg lane width
SUBLANES = 8              # vreg sublane depth
TILE = SUBLANES * LANES   # 1024 elements per (8,128) vreg tile


def _wbce_kernel(x_ref, t_ref, o_ref, *, pos_w, neg_w, rows_valid, tm, npc,
                 last_full_block):
    c = pl.program_id(0)          # core-split axis ("parallel")
    i = pl.program_id(1)          # streaming reduction axis ("arbitrary")
    b = c * npc + i               # logical (UNclamped) block index

    # Output block (1, 8, 128) is resident across the reduction axis: init once.
    @pl.when(i == 0)
    def _():
        o_ref[0] = jnp.zeros((SUBLANES, LANES), jnp.float32)

    x = x_ref[...]
    t = t_ref[...]
    if x.dtype != jnp.float32:    # bf16 logits welcome; no-op when already f32
        x = x.astype(jnp.float32)
    if t.dtype != jnp.float32:
        t = t.astype(jnp.float32)

    # BCEWithLogitsLoss(reduction='none'): max(x,0) - x*t + log1p(exp(-|x|))
    bce = jnp.maximum(x, 0.0) - x * t + jnp.log1p(jnp.exp(-jnp.abs(x)))

    # Exact semantics of the PyTorch module: SUM of the two `where` weights
    # (t==1 -> pos_w + 1, t==0 -> neg_w + 1, anything else -> 2).
    w = (jnp.where(t == 1.0, jnp.float32(pos_w), jnp.float32(1.0))
         + jnp.where(t == 0.0, jnp.float32(neg_w), jnp.float32(1.0)))
    wl = bce * w

    # Hot path: fully-valid blocks accumulate with pure vreg-wise VPU adds
    # (axis-0 sum over (tm//8, 8, 128) groups is lane-local, no XLU).
    @pl.when(b < last_full_block)
    def _():
        o_ref[0] += wl.reshape(tm // SUBLANES, SUBLANES, LANES).sum(axis=0)

    # Tail path: only blocks that can overhang the valid row count pay for the
    # iota + mask. Row-granularity compare (all rows are lane-dense because the
    # wrapper feeds a multiple of 1024 elements) -> no int32 overflow. Clamped
    # duplicate blocks (b >= nblocks) mask to exactly zero; jnp.where selects
    # away any NaN/Inf computed from out-of-bounds garbage rows.
    @pl.when(b >= last_full_block)
    def _():
        row = jax.lax.broadcasted_iota(jnp.int32, (tm, LANES), 0)
        valid = (b * tm + row) < rows_valid
        masked = jnp.where(valid, wl, 0.0)
        o_ref[0] += masked.reshape(tm // SUBLANES, SUBLANES, LANES).sum(axis=0)


def _elementwise_weighted_bce(x, t, pos_w, neg_w):
    x = x.astype(jnp.float32)
    t = t.astype(jnp.float32)
    bce = jnp.maximum(x, 0.0) - x * t + jnp.log1p(jnp.exp(-jnp.abs(x)))
    w = (jnp.where(t == 1.0, jnp.float32(pos_w), jnp.float32(1.0))
         + jnp.where(t == 0.0, jnp.float32(neg_w), jnp.float32(1.0)))
    return bce * w


def _chip_defaults():
    """Per-chip (tm_rows, num_core_slices). Conservative fallback."""
    try:
        kind = jax.devices()[0].device_kind.lower()
    except Exception:
        kind = ""
    if "v7" in kind:
        return 8192, 2     # 16 MiB input double-buffers; split across 2 TCs
    if "v6" in kind:
        return 8192, 1     # 16 MiB buffers, single TC
    return 4096, 1         # v5e (16 MiB scoped-VMEM default) / unknown


def weighted_bce_loss(outputs, targets, pos_weight=1.0, neg_weight=1.0,
                      tm=None, num_cores=None):
    assert outputs.shape == targets.shape
    n = int(outputs.size)

    tm_default, cores_default = _chip_defaults()
    tm = tm_default if tm is None else tm
    num_cores = cores_default if num_cores is None else num_cores

    x = outputs.reshape(-1)
    t = targets.reshape(-1)

    # Kernel handles only the 1024-aligned prefix (no pad copy); the ragged
    # remainder (<1024 elements) is folded in by a tiny jnp epilogue.
    n_main = (n // TILE) * TILE

    total = jnp.float32(0.0)

    if n_main:
        rows = n_main // LANES                    # multiple of 8
        x_main = x[:n_main].reshape(rows, LANES)  # lane-dense slab
        t_main = t[:n_main].reshape(rows, LANES)

        tm_eff = min(tm, rows)                    # still a multiple of 8
        nblocks = pl.cdiv(rows, tm_eff)
        cores = max(1, min(num_cores, nblocks))   # never more slices than blocks
        npc = pl.cdiv(nblocks, cores)
        last_full_block = rows // tm_eff          # blocks below this: fully valid

        kernel = functools.partial(
            _wbce_kernel, pos_w=float(pos_weight), neg_w=float(neg_weight),
            rows_valid=rows, tm=tm_eff, npc=npc,
            last_full_block=last_full_block)

        def in_map(c, i):
            # Clamp so overhang iterations of the second core slice stay in
            # bounds; their contribution is masked to zero inside the kernel.
            return (jnp.minimum(c * npc + i, nblocks - 1), 0)

        partial_sums = pl.pallas_call(
            kernel,
            out_shape=jax.ShapeDtypeStruct((cores, SUBLANES, LANES),
                                           jnp.float32),
            grid_spec=pltpu.PrefetchScalarGridSpec(
                num_scalar_prefetch=0,
                grid=(cores, npc),
                in_specs=[pl.BlockSpec((tm_eff, LANES), in_map),
                          pl.BlockSpec((tm_eff, LANES), in_map)],
                out_specs=pl.BlockSpec((1, SUBLANES, LANES),
                                       lambda c, i: (c, 0, 0)),
            ),
            compiler_params=pltpu.CompilerParams(
                dimension_semantics=("parallel", "arbitrary")),
        )(x_main, t_main)

        # Tiny cross-lane reduce of (cores*8*128) partials in the wrapper.
        total = total + jnp.sum(partial_sums)

    if n_main < n:
        # Ragged tail (<1024 elements): plain jnp, negligible cost.
        total = total + jnp.sum(
            _elementwise_weighted_bce(x[n_main:], t[n_main:],
                                      pos_weight, neg_weight))

    return total / jnp.float32(n)


def _reference_loss(outputs, targets, pos_weight, neg_weight):
    return jnp.mean(_elementwise_weighted_bce(outputs, targets,
                                              pos_weight, neg_weight))


if __name__ == "__main__":
    key = jax.random.PRNGKey(0)
    k1, k2, k3, k4 = jax.random.split(key, 4)

    pos_weight, neg_weight = 2.0, 1.0

    # Case 1: NCHW, 1024-aligned element count (kernel-only path).
    B, C, H, W = 2, 4, 16, 16
    outputs = jax.random.normal(k1, (B, C, H, W), dtype=jnp.float32)
    targets = jax.random.bernoulli(k2, 0.3, (B, C, H, W)).astype(jnp.float32)
    loss = jax.block_until_ready(
        weighted_bce_loss(outputs, targets, pos_weight, neg_weight))
    ref = _reference_loss(outputs, targets, pos_weight, neg_weight)
    assert jnp.allclose(loss, ref, rtol=1e-5, atol=1e-5), (loss, ref)

    # Case 2: ragged size (exercises kernel prefix + jnp tail epilogue).
    shape2 = (2, 3, 17, 13)  # 1326 elements -> 1024 in kernel, 302 in epilogue
    outputs2 = jax.random.normal(k3, shape2, dtype=jnp.float32)
    targets2 = jax.random.bernoulli(k4, 0.5, shape2).astype(jnp.float32)
    loss2 = jax.block_until_ready(
        weighted_bce_loss(outputs2, targets2, pos_weight, neg_weight))
    ref2 = _reference_loss(outputs2, targets2, pos_weight, neg_weight)
    assert jnp.allclose(loss2, ref2, rtol=1e-5, atol=1e-5), (loss2, ref2)

    print("KERNEL_OK")
</pallas_src>

<mosaic_0001>
module attributes {stable_mosaic.version = 11 : i64} {
  func.func @_wbce_kernel(%arg0: i32, %arg1: i32, %arg2: memref<16x128xf32, #tpu.memory_space<vmem>>, %arg3: memref<16x128xf32, #tpu.memory_space<vmem>>, %arg4: memref<1x8x128xf32, #tpu.memory_space<vmem>>) attributes {dimension_semantics = [#tpu.dimension_semantics<parallel>, #tpu.dimension_semantics<arbitrary>], iteration_bounds = array<i64: 1, 1>, scalar_prefetch = 0 : i64, scratch_operands = 0 : i64, tpu.core_type = #tpu.core_type<tc>, window_params = [{transform_indices = @transform_0, window_bounds = array<i64: 16, 128>}, {transform_indices = @transform_1, window_bounds = array<i64: 16, 128>}, {transform_indices = @transform_2, window_bounds = array<i64: 1, 8, 128>}]} {
    %c1_i32 = arith.constant 1 : i32
    %0 = arith.muli %arg0, %c1_i32 : i32
    %1 = arith.addi %0, %arg1 : i32
    %c0_i32 = arith.constant 0 : i32
    %2 = arith.cmpi eq, %arg1, %c0_i32 : i32
    %3 = arith.extui %2 : i1 to i32
    %c0_i32_0 = arith.constant 0 : i32
    %4 = arith.cmpi ne, %3, %c0_i32_0 : i32
    scf.if %4 {
      %cst_15 = arith.constant 0.000000e+00 : f32
      %35 = vector.broadcast %cst_15 : f32 to vector<8x128xf32>
      %c0_16 = arith.constant 0 : index
      %c0_17 = arith.constant 0 : index
      %c0_18 = arith.constant 0 : index
      %36 = vector.load %arg4[%c0_16, %c0_17, %c0_18] : memref<1x8x128xf32, #tpu.memory_space<vmem>>, vector<1x8x128xf32>
      %37 = vector.shape_cast %36 : vector<1x8x128xf32> to vector<8x128xf32>
      %38 = vector.shape_cast %35 : vector<8x128xf32> to vector<1x8x128xf32>
      tpu.vector_store %arg4[%c0_16, %c0_17, %c0_18], %38 {strides = array<i32>} : memref<1x8x128xf32, #tpu.memory_space<vmem>>, vector<1x8x128xf32>,
    } else {
    }
    %c0 = arith.constant 0 : index
    %c0_1 = arith.constant 0 : index
    %5 = vector.load %arg2[%c0, %c0_1] : memref<16x128xf32, #tpu.memory_space<vmem>>, vector<16x128xf32>
    %c0_2 = arith.constant 0 : index
    %c0_3 = arith.constant 0 : index
    %6 = vector.load %arg3[%c0_2, %c0_3] : memref<16x128xf32, #tpu.memory_space<vmem>>, vector<16x128xf32>
    %cst = arith.constant 0.000000e+00 : f32
    %7 = vector.broadcast %cst : f32 to vector<16x128xf32>
    %8 = arith.maximumf %5, %7 : vector<16x128xf32>
    %9 = arith.mulf %5, %6 : vector<16x128xf32>
    %10 = arith.subf %8, %9 : vector<16x128xf32>
    %11 = math.absf %5 : vector<16x128xf32>
    %cst_4 = arith.constant 0.000000e+00 : f32
    %12 = vector.broadcast %cst_4 : f32 to vector<16x128xf32>
    %13 = arith.subf %12, %11 : vector<16x128xf32>
    %14 = math.exp %13 : vector<16x128xf32>
    %15 = math.log1p %14 : vector<16x128xf32>
    %16 = arith.addf %10, %15 : vector<16x128xf32>
    %cst_5 = arith.constant 1.000000e+00 : f32
    %17 = vector.broadcast %cst_5 : f32 to vector<16x128xf32>
    %18 = arith.cmpf oeq, %6, %17 : vector<16x128xf32>
    %cst_6 = arith.constant 2.000000e+00 : f32
    %cst_7 = arith.constant 1.000000e+00 : f32
    %19 = vector.broadcast %cst_6 : f32 to vector<16x128xf32>
    %20 = vector.broadcast %cst_7 : f32 to vector<16x128xf32>
    %21 = arith.select %18, %19, %20 : vector<16x128xi1>, vector<16x128xf32>
    %cst_8 = arith.constant 0.000000e+00 : f32
    %22 = vector.broadcast %cst_8 : f32 to vector<16x128xf32>
    %23 = arith.cmpf oeq, %6, %22 : vector<16x128xf32>
    %cst_9 = arith.constant 1.000000e+00 : f32
    %cst_10 = arith.constant 1.000000e+00 : f32
    %24 = vector.broadcast %cst_9 : f32 to vector<16x128xf32>
    %25 = vector.broadcast %cst_10 : f32 to vector<16x128xf32>
    %26 = arith.select %23, %24, %25 : vector<16x128xi1>, vector<16x128xf32>
    %27 = arith.addf %21, %26 : vector<16x128xf32>
    %28 = arith.mulf %16, %27 : vector<16x128xf32>
    %c1_i32_11 = arith.constant 1 : i32
    %29 = arith.cmpi slt, %1, %c1_i32_11 : i32
    %30 = arith.extui %29 : i1 to i32
    %c0_i32_12 = arith.constant 0 : i32
    %31 = arith.cmpi ne, %30, %c0_i32_12 : i32
    scf.if %31 {
      %c0_15 = arith.constant 0 : index
      %c0_16 = arith.constant 0 : index
      %c0_17 = arith.constant 0 : index
      %35 = vector.load %arg4[%c0_15, %c0_16, %c0_17] : memref<1x8x128xf32, #tpu.memory_space<vmem>>, vector<1x8x128xf32>
      %36 = vector.shape_cast %35 : vector<1x8x128xf32> to vector<8x128xf32>
      %37 = vector.shape_cast %28 : vector<16x128xf32> to vector<2x8x128xf32>
      %cst_18 = arith.constant dense<0.000000e+00> : vector<8x128xf32>
      %38 = vector.multi_reduction <add>, %37, %cst_18 [0] : vector<2x8x128xf32> to vector<8x128xf32>
      %39 = arith.addf %36, %38 : vector<8x128xf32>
      %c0_19 = arith.constant 0 : index
      %c0_20 = arith.constant 0 : index
      %c0_21 = arith.constant 0 : index
      %40 = vector.load %arg4[%c0_19, %c0_20, %c0_21] : memref<1x8x128xf32, #tpu.memory_space<vmem>>, vector<1x8x128xf32>
      %41 = vector.shape_cast %40 : vector<1x8x128xf32> to vector<8x128xf32>
      %42 = vector.shape_cast %39 : vector<8x128xf32> to vector<1x8x128xf32>
      tpu.vector_store %arg4[%c0_19, %c0_20, %c0_21], %42 {strides = array<i32>} : memref<1x8x128xf32, #tpu.memory_space<vmem>>, vector<1x8x128xf32>,
    } else {
    }
    %c1_i32_13 = arith.constant 1 : i32
    %32 = arith.cmpi sge, %1, %c1_i32_13 : i32
    %33 = arith.extui %32 : i1 to i32
    %c0_i32_14 = arith.constant 0 : i32
    %34 = arith.cmpi ne, %33, %c0_i32_14 : i32
    scf.if %34 {
      %35 = tpu.iota {dimensions = array<i32: 0>} : vector<16x128xi32>
      %c16_i32 = arith.constant 16 : i32
      %36 = arith.muli %1, %c16_i32 : i32
      %37 = vector.broadcast %36 : i32 to vector<16x128xi32>
      %38 = arith.addi %37, %35 : vector<16x128xi32>
      %c16_i32_15 = arith.constant 16 : i32
      %39 = vector.broadcast %c16_i32_15 : i32 to vector<16x128xi32>
      %40 = arith.cmpi slt, %38, %39 : vector<16x128xi32>
      %cst_16 = arith.constant 0.000000e+00 : f32
      %41 = vector.broadcast %cst_16 : f32 to vector<16x128xf32>
      %42 = arith.select %40, %28, %41 : vector<16x128xi1>, vector<16x128xf32>
      %c0_17 = arith.constant 0 : index
      %c0_18 = arith.constant 0 : index
      %c0_19 = arith.constant 0 : index
      %43 = vector.load %arg4[%c0_17, %c0_18, %c0_19] : memref<1x8x128xf32, #tpu.memory_space<vmem>>, vector<1x8x128xf32>
      %44 = vector.shape_cast %43 : vector<1x8x128xf32> to vector<8x128xf32>
      %45 = vector.shape_cast %42 : vector<16x128xf32> to vector<2x8x128xf32>
      %cst_20 = arith.constant dense<0.000000e+00> : vector<8x128xf32>
      %46 = vector.multi_reduction <add>, %45, %cst_20 [0] : vector<2x8x128xf32> to vector<8x128xf32>
      %47 = arith.addf %44, %46 : vector<8x128xf32>
      %c0_21 = arith.constant 0 : index
      %c0_22 = arith.constant 0 : index
      %c0_23 = arith.constant 0 : index
      %48 = vector.load %arg4[%c0_21, %c0_22, %c0_23] : memref<1x8x128xf32, #tpu.memory_space<vmem>>, vector<1x8x128xf32>
      %49 = vector.shape_cast %48 : vector<1x8x128xf32> to vector<8x128xf32>
      %50 = vector.shape_cast %47 : vector<8x128xf32> to vector<1x8x128xf32>
      tpu.vector_store %arg4[%c0_21, %c0_22, %c0_23], %50 {strides = array<i32>} : memref<1x8x128xf32, #tpu.memory_space<vmem>>, vector<1x8x128xf32>,
    } else {
    }
    return
  }
  func.func @transform_0(%arg0: i32, %arg1: i32) -> (i32, i32) {
    %c1_i32 = arith.constant 1 : i32
    %0 = arith.muli %arg0, %c1_i32 : i32
    %1 = arith.addi %0, %arg1 : i32
    %c0_i32 = arith.constant 0 : i32
    %2 = arith.minsi %1, %c0_i32 : i32
    %c0_i32_0 = arith.constant 0 : i32
    %c0_i32_1 = arith.constant 0 : i32
    return %2, %c0_i32_0 : i32, i32
  }
  func.func @transform_1(%arg0: i32, %arg1: i32) -> (i32, i32) {
    %c1_i32 = arith.constant 1 : i32
    %0 = arith.muli %arg0, %c1_i32 : i32
    %1 = arith.addi %0, %arg1 : i32
    %c0_i32 = arith.constant 0 : i32
    %2 = arith.minsi %1, %c0_i32 : i32
    %c0_i32_0 = arith.constant 0 : i32
    %c0_i32_1 = arith.constant 0 : i32
    return %2, %c0_i32_0 : i32, i32
  }
  func.func @transform_2(%arg0: i32, %arg1: i32) -> (i32, i32, i32) {
    %c0_i32 = arith.constant 0 : i32
    %c0_i32_0 = arith.constant 0 : i32
    %c0_i32_1 = arith.constant 0 : i32
    return %arg0, %c0_i32, %c0_i32_0 : i32, i32, i32
  }
}

</mosaic_0001>

<llo_original>
// kernel: tpu_custom_call.1
$region0: #{tpu_custom_call.1}
  #allocation0 [shape = 'u32[]', space=smem, size = 0x4, offset = 0x4, fixed_abs, tag = 'smem constant byte address 0x4 - core index']
  #allocation1 [shape = 'u32[144,128]{1,0:T(1,128)}', space=vmem, size = 0x12000, scoped, tag = 'internal scratch']
  %s0 = inlined_call_operand.hbm [shape: f32[16,128], index: 0, kind: input, shape index: {}]
  %s1 = inlined_call_operand.hbm [shape: f32[16,128], index: 1, kind: input, shape index: {}]
  %s2 = inlined_call_operand.hbm [shape: f32[1,8,128], index: 2, kind: output, shape index: {}]
  %s3 = sld [smem:[#allocation0]]
  $region38: #{tpu_custom_call.1} parent=0
    _
  %s5 = ssub.s32 1, %s3
  %s6 = scalar_select 0, %s5, %s3
  $region1: #{tpu_custom_call.1} parent=0
    #allocation2 [shape = 'u8[8192]{0}', space=vmem, size = 0x2000, scoped, tag = 'input window, operand 0, single buffered']
    #allocation3 [shape = 's32[1]{0}', space=sflag, size = 0x4, scoped, tag = 'scoped memory for tpu_custom_call.1']
    #allocation4 [shape = 's32[1]{0}', space=sflag, size = 0x4, scoped, tag = 'scoped memory for tpu_custom_call.1']
    #allocation5 [shape = 'u8[8192]{0}', space=vmem, size = 0x2000, scoped, tag = 'input window, operand 1, single buffered']
    #allocation6 [shape = 's32[1]{0}', space=sflag, size = 0x4, scoped, tag = 'scoped memory for tpu_custom_call.1']
    #allocation7 [shape = 'u8[4096]{0}', space=vmem, size = 0x1000, scoped, tag = 'output window, operand 0, single buffered']
    %7 = vsyncpa [#allocation3], 0
    %8 = vsyncpa [#allocation6], 0
    %9 = vsyncpa [#allocation4], 0
    // Predicated region
    $region2: #{tpu_custom_call.1} parent=1 // pred_check
      _
    $region3: #{tpu_custom_call.1} parent=1 // pred_check_branch
      %11 = sbr.rel (0) target = $region5
    $region4: #{tpu_custom_call.1} parent=1 // pred_region
      %s12 = sadd.s32 0, 0
      %p13 = scmp.lt.s32.totalorder %s12, 0
      %s14 = scalar_select %p13, %s12, 0
      %s15 = smul.u32 2, %s14
      %s17 = ssub.s32 256, 256
      %18 = vsyncadd [#allocation3], %s17
      %s19 = smul.addr %s15, 128
      %s20 = scalar_lea.hbm %s0, %s19
      %s21 = sshll.u32 [#allocation2], 4
      %s22 = int_to_ptr.vmem [resolvable:$true] %s21
      %27 = dma.hbm_to_vmem [thread:$0]  %s20, 256, %s22, [#allocation3], 128, 128, 8
    $region5: #{tpu_custom_call.1} parent=1 // pred_fallthru
      _
    // Predicated region
    $region6: #{tpu_custom_call.1} parent=1 // pred_check
      _
    $region7: #{tpu_custom_call.1} parent=1 // pred_check_branch
      %29 = sbr.rel (0) target = $region9
    $region8: #{tpu_custom_call.1} parent=1 // pred_region
      %s30 = sadd.s32 0, 0
      %p31 = scmp.lt.s32.totalorder %s30, 0
      %s32 = scalar_select %p31, %s30, 0
      %s33 = smul.u32 2, %s32
      %s35 = ssub.s32 256, 256
      %36 = vsyncadd [#allocation6], %s35
      %s37 = smul.addr %s33, 128
      %s38 = scalar_lea.hbm %s1, %s37
      %s39 = sshll.u32 [#allocation5], 4
      %s40 = int_to_ptr.vmem [resolvable:$true] %s39
      %45 = dma.hbm_to_vmem [thread:$0]  %s38, 256, %s40, [#allocation6], 128, 128, 8
    $region9: #{tpu_custom_call.1} parent=1 // pred_fallthru
      _
    // Predicated region
    $region10: #{tpu_custom_call.1} parent=1 // pred_check
      _
    $region11: #{tpu_custom_call.1} parent=1 // pred_check_branch
      %47 = sbr.rel (0) target = $region13
    $region12: #{tpu_custom_call.1} parent=1 // pred_region
      %48 = dma.done [#allocation3], 256
    $region13: #{tpu_custom_call.1} parent=1 // pred_fallthru
      _
    // Predicated region
    $region14: #{tpu_custom_call.1} parent=1 // pred_check
      _
    $region15: #{tpu_custom_call.1} parent=1 // pred_check_branch
      %50 = sbr.rel (0) target = $region17
    $region16: #{tpu_custom_call.1} parent=1 // pred_region
      %51 = dma.done [#allocation6], 256
    $region17: #{tpu_custom_call.1} parent=1 // pred_fallthru
      _
    %s52 = sadd.s32 0, 0
    %p53 = scmp.lt.s32.totalorder %s52, 0
    %s54 = scalar_select %p53, %s52, 0
    %s55 = smul.u32 2, %s54
    %s56 = sadd.s32 0, 0
    %p57 = scmp.lt.s32.totalorder %s56, 0
    %s58 = scalar_select %p57, %s56, 0
    %s59 = smul.u32 2, %s58
    %s60 = sadd.s32 0, 0
    %p61 = scmp.eq.s32.totalorder 0, 0
    // Predicated region
    $region18: #{tpu_custom_call.1} parent=1 // pred_check
      %p62 = pneg %p61
    $region19: #{tpu_custom_call.1} parent=1 // pred_check_branch
      %64 = sbr.rel (%p62) target = $region21
    $region20: #{tpu_custom_call.1} parent=1 // pred_region
      %65 = vst [vmem:[#allocation7] sm:$0xff] 0.0
    $region21: #{tpu_custom_call.1} parent=1 // pred_fallthru
      _
    %v66 = vld [vmem:[#allocation2] sm:$0xff]
    %v67 = vld [vmem:[#allocation2 + $0x8] sm:$0xff]
    %v68 = vld [vmem:[#allocation5] sm:$0xff]
    %v69 = vld [vmem:[#allocation5 + $0x8] sm:$0xff]
    %v70 = vmax.f32 %v66, 0.0
    %v71 = vmax.f32 %v67, 0.0
    %v72 = vmul.f32 %v66, %v68
    %v73 = vmul.f32 %v67, %v69
    %v74 = vsub.f32 %v70, %v72
    %v75 = vsub.f32 %v71, %v73
    %v76 = vand.u32 2147483647, %v66
    %v77 = vand.u32 2147483647, %v67
    %v78 = vsub.f32 0.0, %v76
    %v79 = vsub.f32 0.0, %v77
    %v80 = vmul.f32 %v78, 1.442695
    %v81 = vpow.pop %v80
    %v82 = vmul.f32 %v79, 1.442695
    %v83 = vpow.pop %v82
    %v84 = vadd.f32 %v81, 1.0
    %v85 = vlog2.pop %v84
    %v86 = vmul.f32 %v85, 0.6931472
    %v87 = vmul.f32 -0.5, %v81
    %v88 = vadd.f32 %v87, 1.0
    %v89 = vmul.f32 %v88, %v81
    %v90 = vand.u32 2147483647, %v81
    %vm91 = vcmp.lt.f32.partialorder %v90, 0.0004427343
    %v92 = vsel %vm91, %v89, %v86
    %v93 = vadd.f32 %v83, 1.0
    %v94 = vlog2.pop %v93
    %v95 = vmul.f32 %v94, 0.6931472
    %v96 = vmul.f32 -0.5, %v83
    %v97 = vadd.f32 %v96, 1.0
    %v98 = vmul.f32 %v97, %v83
    %v99 = vand.u32 2147483647, %v83
    %vm100 = vcmp.lt.f32.partialorder %v99, 0.0004427343
    %v101 = vsel %vm100, %v98, %v95
    %v102 = vadd.f32 %v74, %v92
    %v103 = vadd.f32 %v75, %v101
    %vm104 = vcmp.eq.f32.partialorder %v68, 1.0
    %vm105 = vcmp.eq.f32.partialorder %v69, 1.0
    %v106 = vsel %vm104, 2.0, 1.0
    %v107 = vsel %vm105, 2.0, 1.0
    %v108 = vadd.f32 %v106, 1.0
    %v109 = vadd.f32 %v107, 1.0
    %v110 = vmul.f32 %v102, %v108
    %v111 = vmul.f32 %v103, %v109
    %p112 = scmp.lt.s32.totalorder %s60, 1
    // Predicated region
    $region22: #{tpu_custom_call.1} parent=1 // pred_check
      %p113 = pneg %p112
    $region23: #{tpu_custom_call.1} parent=1 // pred_check_branch
      %115 = sbr.rel (%p113) target = $region25
    $region24: #{tpu_custom_call.1} parent=1 // pred_region
      %v116 = vld [vmem:[#allocation7] sm:$0xff]
      %v117 = vadd.f32 %v110, %v111
      %v118 = vadd.f32 %v116, %v117
      %119 = vst [vmem:[#allocation7] sm:$0xff] %v118
    $region25: #{tpu_custom_call.1} parent=1 // pred_fallthru
      _
    %p120 = scmp.ge.s32.totalorder %s60, 1
    // Predicated region
    $region26: #{tpu_custom_call.1} parent=1 // pred_check
      %p121 = pneg %p120
    $region27: #{tpu_custom_call.1} parent=1 // pred_check_branch
      %123 = sbr.rel (%p121) target = $region29
    $region28: #{tpu_custom_call.1} parent=1 // pred_region
      %v124 = vlaneseq
      %v125 = vshrl.u32 %v124, 7
      %v126 = vadd.s32 %v125, 8
      %s127 = smul.u32 %s60, 16
      %v128 = vstv %s127
      %v129 = vadd.s32 %v128, %v125
      %v130 = vadd.s32 %v128, %v126
      %vm131 = vcmp.lt.s32.totalorder %v129, 16
      %vm132 = vcmp.lt.s32.totalorder %v130, 16
      %v133 = vsel %vm131, %v110, 0.0
      %v134 = vsel %vm132, %v111, 0.0
      %v135 = vld [vmem:[#allocation7] sm:$0xff]
      %v136 = vadd.f32 %v133, %v134
      %v137 = vadd.f32 %v135, %v136
      %138 = vst [vmem:[#allocation7] sm:$0xff] %v137
    $region29: #{tpu_custom_call.1} parent=1 // pred_fallthru
      _
    // Predicated region
    $region30: #{tpu_custom_call.1} parent=1 // pred_check
      _
    $region31: #{tpu_custom_call.1} parent=1 // pred_check_branch
      %140 = sbr.rel (0) target = $region33
    $region32: #{tpu_custom_call.1} parent=1 // pred_region
      %s142 = ssub.s32 128, 128
      %143 = vsyncadd [#allocation4], %s142
      %s145 = sshll.u32 [#allocation7], 4
      %s146 = int_to_ptr.vmem [resolvable:$true] %s145
      %148 = dma.vmem_to_hbm [thread:$0]  %s146, 128, %s2, [#allocation4]
    $region33: #{tpu_custom_call.1} parent=1 // pred_fallthru
      _
    // Predicated region
    $region34: #{tpu_custom_call.1} parent=1 // pred_check
      _
    $region35: #{tpu_custom_call.1} parent=1 // pred_check_branch
      %150 = sbr.rel (0) target = $region37
    $region36: #{tpu_custom_call.1} parent=1 // pred_region
      %151 = dma.done [#allocation4], 128
    $region37: #{tpu_custom_call.1} parent=1 // pred_fallthru
      _
    %152 = vsyncpa [#allocation3], 1
    %153 = vsyncpa [#allocation6], 1
    %154 = vsyncpa [#allocation4], 1

</llo_original>
